<compile_context>
chip_gen: v7x
topology: tpu7x:2x2x1
jax: 0.10.0
libtpu: 0.0.40
codegen_flags: <defaults>
</compile_context>

<pallas_src>
import jax
import jax.numpy as jnp
from jax import lax
from jax.experimental import pallas as pl
from jax.experimental.pallas import tpu as pltpu

N_CTX = 2
N_STATES = 16
STATE_DIM = 32
MLP_IN_DIM = 2 * STATE_DIM          # 64
HIDDEN_DIM = 128
H_DIM = HIDDEN_DIM // N_CTX         # 64
OUTPUT_DIM = 2
FUSED_OUT = 2 * HIDDEN_DIM          # 256 = [hidden_pre | ctrl logits @128:130 | pad]
ONE_HOT_DIM = 2 * N_STATES + N_CTX  # 34  = [onehot(f1) | onehot(f2) | onehot(ctx)]
K_PAD = 128                         # one-hot contraction dim padded to a full lane tile
DEFAULT_TB = 2048                   # batch tile: safe for v7x's 64 MiB VMEM, good for v5e/v6e


def _round_up(n, m):
    return ((n + m - 1) // m) * m


def cognitive_kernel(idx_ref, weff_ref, bf_ref, wout_ref, bout_ref,
                     hid_ref, out_ref):
    tb = hid_ref.shape[0]

    # --- build [onehot(f1) | onehot(f2) | onehot(ctx)] rows on the fly (VPU) ---
    f1 = idx_ref[:, 0:1]                                           # (TB,1) int32
    f2 = idx_ref[:, 1:2]
    cx = idx_ref[:, 2:3]
    kpos = lax.broadcasted_iota(jnp.int32, (tb, K_PAD), 1)
    hit = (kpos == f1) | (kpos == f2 + N_STATES) | (kpos == cx + 2 * N_STATES)
    one_hot = jnp.where(hit, 1.0, 0.0).astype(jnp.bfloat16)        # (TB, K_PAD)

    # --- fused (gather + linear + control) matmul on the MXU, f32 accumulate ---
    z = jnp.dot(one_hot, weff_ref[...],
                preferred_element_type=jnp.float32) + bf_ref[...]  # (TB, 256)

    hidden = jnp.maximum(z[:, :HIDDEN_DIM], 0.0)                   # ReLU (TB,128)

    # --- 2-way softmax on the control logits (pure lane slices, no reduce) ---
    l0 = z[:, HIDDEN_DIM:HIDDEN_DIM + 1]                           # (TB,1)
    l1 = z[:, HIDDEN_DIM + 1:HIDDEN_DIM + 2]                       # (TB,1)
    m = jnp.maximum(l0, l1)
    e0 = jnp.exp(l0 - m)
    e1 = jnp.exp(l1 - m)
    inv = 1.0 / (e0 + e1)
    cs0 = e0 * inv
    cs1 = e1 * inv

    # --- interleaved gating h[:, m] * cs[:, m % 2] as a VPU parity select ---
    lane = lax.broadcasted_iota(jnp.int32, (tb, HIDDEN_DIM), 1)
    mod = jnp.where((lane % 2) == 0, cs0, cs1)                     # (TB,128)
    h_mod = hidden * mod

    hid_ref[...] = h_mod                                           # reps['hidden']

    # --- output projection, emitted transposed (2, TB): lane-dense store ---
    out_t = lax.dot_general(wout_ref[...], h_mod,
                            dimension_numbers=(((1,), (1,)), ((), ())),
                            preferred_element_type=jnp.float32) + bout_ref[...]
    out_ref[...] = out_t


def _pallas_forward(idx, w_eff, b_fused, w_out, b_out_t, *, tb):
    bp = idx.shape[0]
    grid = (bp // tb,)
    weight_bytes = (w_eff.size * 2 + b_fused.size * 4
                    + w_out.size * 4 + b_out_t.size * 4)
    cost = pl.CostEstimate(
        flops=2 * bp * (K_PAD * FUSED_OUT + OUTPUT_DIM * HIDDEN_DIM),
        transcendentals=2 * bp,
        bytes_accessed=bp * (3 * 4 + HIDDEN_DIM * 4 + OUTPUT_DIM * 4) + weight_bytes)

    return pl.pallas_call(
        cognitive_kernel,
        out_shape=(
            jax.ShapeDtypeStruct((bp, HIDDEN_DIM), jnp.float32),   # gated hidden
            jax.ShapeDtypeStruct((OUTPUT_DIM, bp), jnp.float32),   # logits^T
        ),
        grid=grid,
        in_specs=[
            pl.BlockSpec((tb, 3), lambda i: (i, 0)),               # packed indices
            pl.BlockSpec((K_PAD, FUSED_OUT), lambda i: (0, 0)),    # fused weight (VMEM-resident)
            pl.BlockSpec((1, FUSED_OUT), lambda i: (0, 0)),        # fused bias
            pl.BlockSpec((OUTPUT_DIM, HIDDEN_DIM), lambda i: (0, 0)),  # out weight
            pl.BlockSpec((OUTPUT_DIM, 1), lambda i: (0, 0)),       # out bias (column)
        ],
        out_specs=(
            pl.BlockSpec((tb, HIDDEN_DIM), lambda i: (i, 0)),
            pl.BlockSpec((OUTPUT_DIM, tb), lambda i: (0, i)),
        ),
        compiler_params=pltpu.CompilerParams(
            dimension_semantics=("parallel",),
            vmem_limit_bytes=32 * 1024 * 1024),
        cost_estimate=cost,
    )(idx, w_eff, b_fused, w_out, b_out_t)


@jax.jit
def _forward_jit(params, ctx, f1, f2):
    B = f1.shape[0]
    idx = jnp.stack([f1.astype(jnp.int32), f2.astype(jnp.int32),
                     ctx.astype(jnp.int32)], axis=-1)              # (B, 3)

    tb = min(DEFAULT_TB, _round_up(max(B, 1), 8))                  # static (shape-derived)
    bp = _round_up(B, tb)
    if bp != B:
        idx = jnp.pad(idx, ((0, bp - B), (0, 0)))

    hidden, out_t = _pallas_forward(idx, params["w_eff"], params["b_fused"],
                                    params["w_out"], params["b_out_t"], tb=tb)
    return out_t[:, :B].T, hidden[:B]


class CognitiveControllerPallas:
    """JAX/Pallas re-implementation of CognitiveController (use_images=False)."""

    def __init__(self, key, ctx_scale=1.0, use_images=False):
        if use_images:
            # TODO(synk): use_images=True branch (CNN face embedding) not implemented;
            # this script covers the nn.Embedding path.
            raise NotImplementedError("use_images=True (CNN) path not implemented")
        self.ctx_scale = float(ctx_scale)

        ks = jax.random.split(key, 5)

        def xavier_normal(k, shape):
            fan_out, fan_in = shape
            std = (2.0 / (fan_in + fan_out)) ** 0.5
            return std * jax.random.normal(k, shape, dtype=jnp.float32)

        def linear_init(k, in_dim, out_dim):
            kw, kb = jax.random.split(k)
            bound = 1.0 / (in_dim ** 0.5)
            w_t = jax.random.uniform(kw, (in_dim, out_dim),
                                     minval=-bound, maxval=bound, dtype=jnp.float32)
            b = jax.random.uniform(kb, (out_dim,),
                                   minval=-bound, maxval=bound, dtype=jnp.float32)
            return w_t, b

        # Embedding tables (xavier_normal_ like the PyTorch init).
        self.ctx_embedding = xavier_normal(ks[0], (N_CTX, STATE_DIM))
        self.face_embedding = xavier_normal(ks[1], (N_STATES, STATE_DIM))

        # Linear layers (kept un-fused for the pure-JAX reference).
        self.w_ctrl_t, self.b_ctrl = linear_init(ks[2], STATE_DIM, N_CTX)       # (32,2)
        self.w_lin_t, self.b_lin = linear_init(ks[3], MLP_IN_DIM, HIDDEN_DIM)   # (64,128)
        self.w_out_t, self.b_out = linear_init(ks[4], HIDDEN_DIM, OUTPUT_DIM)   # (128,2)

        # ---- host-side fusion: fold embedding gathers + both input matmuls ----
        # One-hot rows 0:16   -> f1 face embedding path into hidden columns.
        # One-hot rows 16:32  -> f2 face embedding path into hidden columns.
        # One-hot rows 32:34  -> (ctx_scale * ctx) path into control-logit columns.
        w_eff = jnp.zeros((K_PAD, FUSED_OUT), jnp.float32)
        w_eff = w_eff.at[:N_STATES, :HIDDEN_DIM].set(
            self.face_embedding @ self.w_lin_t[:STATE_DIM])
        w_eff = w_eff.at[N_STATES:2 * N_STATES, :HIDDEN_DIM].set(
            self.face_embedding @ self.w_lin_t[STATE_DIM:])
        w_eff = w_eff.at[2 * N_STATES:ONE_HOT_DIM,
                         HIDDEN_DIM:HIDDEN_DIM + N_CTX].set(
            (self.ctx_scale * self.ctx_embedding) @ self.w_ctrl_t)

        b_fused = jnp.zeros((1, FUSED_OUT), jnp.float32)
        b_fused = b_fused.at[0, :HIDDEN_DIM].set(self.b_lin)
        b_fused = b_fused.at[0, HIDDEN_DIM:HIDDEN_DIM + N_CTX].set(self.b_ctrl)

        self.params = {
            "w_eff": w_eff.astype(jnp.bfloat16),            # bf16 MXU operand
            "b_fused": b_fused,                              # f32 epilogue bias
            "w_out": self.w_out_t.T,                         # (2,128) f32, PyTorch (out,in)
            "b_out_t": self.b_out.reshape(OUTPUT_DIM, 1),    # (2,1) f32
        }

    def forward(self, ctx, f1, f2):
        # ctx, f1, f2 : (B,) int32 indices
        out, hidden = _forward_jit(self.params, ctx, f1, f2)
        return out, {"hidden": hidden}

    # Pure-JAX reference of the PyTorch forward (for correctness checking only).
    def reference_forward(self, ctx, f1, f2):
        B = f1.shape[0]
        ctx_e = self.ctx_scale * jnp.take(self.ctx_embedding, ctx, axis=0)
        f1_e = jnp.take(self.face_embedding, f1, axis=0)
        f2_e = jnp.take(self.face_embedding, f2, axis=0)
        x = jnp.concatenate([f1_e, f2_e], axis=-1)
        h = jax.nn.relu(x @ self.w_lin_t + self.b_lin)                 # (B,128)
        cs = jax.nn.softmax(ctx_e @ self.w_ctrl_t + self.b_ctrl, -1)   # (B,2)
        h_r = h.reshape(B, H_DIM, N_CTX) * cs[:, None, :]
        h_mod = h_r.reshape(B, HIDDEN_DIM)
        out = h_mod @ self.w_out_t + self.b_out
        return out, h_mod


if __name__ == "__main__":
    key = jax.random.PRNGKey(0)
    model_key, data_key = jax.random.split(key)
    model = CognitiveControllerPallas(model_key, ctx_scale=1.0)

    def run_and_check(B, dkey):
        k1, k2, k3 = jax.random.split(dkey, 3)
        ctx = jax.random.randint(k1, (B,), 0, N_CTX, dtype=jnp.int32)
        f1 = jax.random.randint(k2, (B,), 0, N_STATES, dtype=jnp.int32)
        f2 = jax.random.randint(k3, (B,), 0, N_STATES, dtype=jnp.int32)

        out, reps = model.forward(ctx, f1, f2)
        jax.block_until_ready(out)
        jax.block_until_ready(reps["hidden"])

        assert out.shape == (B, OUTPUT_DIM)
        assert reps["hidden"].shape == (B, HIDDEN_DIM)

        out_ref, hid_ref = model.reference_forward(ctx, f1, f2)
        assert jnp.allclose(out, out_ref, atol=1e-2, rtol=1e-2), "logits mismatch"
        assert jnp.allclose(reps["hidden"], hid_ref, atol=1e-2, rtol=1e-2), "hidden mismatch"

    dk1, dk2 = jax.random.split(data_key)
    run_and_check(8, dk1)      # small demo batch
    run_and_check(300, dk2)    # exercises batch padding inside the wrapper

    print("KERNEL_OK")
</pallas_src>

<mosaic_0001>
module attributes {stable_mosaic.version = 11 : i64} {
  func.func @cognitive_kernel(%arg0: i32, %arg1: memref<8x3xi32, #tpu.memory_space<vmem>>, %arg2: memref<128x256xbf16, #tpu.memory_space<vmem>>, %arg3: memref<1x256xf32, #tpu.memory_space<vmem>>, %arg4: memref<2x128xf32, #tpu.memory_space<vmem>>, %arg5: memref<2x1xf32, #tpu.memory_space<vmem>>, %arg6: memref<8x128xf32, #tpu.memory_space<vmem>>, %arg7: memref<2x8xf32, #tpu.memory_space<vmem>>) attributes {dimension_semantics = [#tpu.dimension_semantics<parallel>], iteration_bounds = array<i64: 1>, scalar_prefetch = 0 : i64, scratch_operands = 0 : i64, tpu.core_type = #tpu.core_type<tc>, window_params = [{transform_indices = @transform_0, window_bounds = array<i64: 8, 3>}, {pipeline_mode = #tpu.pipeline_mode<synchronous>, transform_indices = @transform_1, window_bounds = array<i64: 128, 256>}, {pipeline_mode = #tpu.pipeline_mode<synchronous>, transform_indices = @transform_2, window_bounds = array<i64: 1, 256>}, {pipeline_mode = #tpu.pipeline_mode<synchronous>, transform_indices = @transform_3, window_bounds = array<i64: 2, 128>}, {pipeline_mode = #tpu.pipeline_mode<synchronous>, transform_indices = @transform_4, window_bounds = array<i64: 2, 1>}, {transform_indices = @transform_5, window_bounds = array<i64: 8, 128>}, {transform_indices = @transform_6, window_bounds = array<i64: 2, 8>}]} {
    %c0 = arith.constant 0 : index
    %c0_0 = arith.constant 0 : index
    %0 = vector.load %arg1[%c0, %c0_0] : memref<8x3xi32, #tpu.memory_space<vmem>>, vector<8x1xi32>
    %c0_1 = arith.constant 0 : index
    %c1 = arith.constant 1 : index
    %1 = vector.load %arg1[%c0_1, %c1] : memref<8x3xi32, #tpu.memory_space<vmem>>, vector<8x1xi32>
    %c0_2 = arith.constant 0 : index
    %c2 = arith.constant 2 : index
    %2 = vector.load %arg1[%c0_2, %c2] : memref<8x3xi32, #tpu.memory_space<vmem>>, vector<8x1xi32>
    %3 = tpu.iota {dimensions = array<i32: 1>} : vector<8x128xi32>
    %4 = vector.broadcast %0 : vector<8x1xi32> to vector<8x128xi32>
    %5 = arith.cmpi eq, %3, %4 : vector<8x128xi32>
    %c16_i32 = arith.constant 16 : i32
    %6 = vector.broadcast %c16_i32 : i32 to vector<8x1xi32>
    %7 = arith.addi %1, %6 : vector<8x1xi32>
    %8 = vector.broadcast %7 : vector<8x1xi32> to vector<8x128xi32>
    %9 = arith.cmpi eq, %3, %8 : vector<8x128xi32>
    %10 = arith.ori %5, %9 : vector<8x128xi1>
    %c32_i32 = arith.constant 32 : i32
    %11 = vector.broadcast %c32_i32 : i32 to vector<8x1xi32>
    %12 = arith.addi %2, %11 : vector<8x1xi32>
    %13 = vector.broadcast %12 : vector<8x1xi32> to vector<8x128xi32>
    %14 = arith.cmpi eq, %3, %13 : vector<8x128xi32>
    %15 = arith.ori %10, %14 : vector<8x128xi1>
    %cst = arith.constant 1.000000e+00 : f32
    %cst_3 = arith.constant 0.000000e+00 : f32
    %16 = vector.broadcast %cst : f32 to vector<8x128xf32>
    %17 = vector.broadcast %cst_3 : f32 to vector<8x128xf32>
    %18 = arith.select %15, %16, %17 : vector<8x128xi1>, vector<8x128xf32>
    %19 = arith.truncf %18 : vector<8x128xf32> to vector<8x128xbf16>
    %c0_4 = arith.constant 0 : index
    %c0_5 = arith.constant 0 : index
    %20 = vector.load %arg2[%c0_4, %c0_5] : memref<128x256xbf16, #tpu.memory_space<vmem>>, vector<128x256xbf16>
    %cst_6 = arith.constant dense<0.000000e+00> : vector<8x256xf32>
    %21 = tpu.matmul %19, %20, %cst_6 {dimension_numbers = #tpu.dot_dimension_numbers<[1], [0], [0], [1], [0, 0, 1, 1], [], []>} : vector<8x128xbf16>, vector<128x256xbf16>, vector<8x256xf32> -> vector<8x256xf32>
    %c0_7 = arith.constant 0 : index
    %c0_8 = arith.constant 0 : index
    %22 = vector.load %arg3[%c0_7, %c0_8] : memref<1x256xf32, #tpu.memory_space<vmem>>, vector<1x256xf32>
    %23 = vector.broadcast %22 : vector<1x256xf32> to vector<8x256xf32>
    %24 = arith.addf %21, %23 : vector<8x256xf32>
    %25 = vector.extract_strided_slice %24 {offsets = [0, 0], sizes = [8, 128], strides = [1, 1]} : vector<8x256xf32> to vector<8x128xf32>
    %cst_9 = arith.constant 0.000000e+00 : f32
    %26 = vector.broadcast %cst_9 : f32 to vector<8x128xf32>
    %27 = arith.maximumf %25, %26 : vector<8x128xf32>
    %28 = vector.extract_strided_slice %24 {offsets = [0, 128], sizes = [8, 1], strides = [1, 1]} : vector<8x256xf32> to vector<8x1xf32>
    %29 = vector.extract_strided_slice %24 {offsets = [0, 129], sizes = [8, 1], strides = [1, 1]} : vector<8x256xf32> to vector<8x1xf32>
    %30 = arith.maximumf %28, %29 : vector<8x1xf32>
    %31 = arith.subf %28, %30 : vector<8x1xf32>
    %32 = math.exp %31 : vector<8x1xf32>
    %33 = arith.subf %29, %30 : vector<8x1xf32>
    %34 = math.exp %33 : vector<8x1xf32>
    %35 = arith.addf %32, %34 : vector<8x1xf32>
    %cst_10 = arith.constant 1.000000e+00 : f32
    %36 = vector.broadcast %cst_10 : f32 to vector<8x1xf32>
    %37 = arith.divf %36, %35 : vector<8x1xf32>
    %38 = arith.mulf %32, %37 : vector<8x1xf32>
    %39 = arith.mulf %34, %37 : vector<8x1xf32>
    %40 = tpu.iota {dimensions = array<i32: 1>} : vector<8x128xi32>
    %c2_i32 = arith.constant 2 : i32
    %c0_i32 = arith.constant 0 : i32
    %41 = arith.cmpi eq, %c2_i32, %c0_i32 : i32
    %c1_i32 = arith.constant 1 : i32
    %42 = arith.select %41, %c1_i32, %c2_i32 : i32
    %43 = vector.broadcast %42 : i32 to vector<8x128xi32>
    %44 = arith.remsi %40, %43 : vector<8x128xi32>
    %c0_i32_11 = arith.constant 0 : i32
    %45 = vector.broadcast %c0_i32_11 : i32 to vector<8x128xi32>
    %46 = arith.cmpi ne, %44, %45 : vector<8x128xi32>
    %c0_i32_12 = arith.constant 0 : i32
    %47 = vector.broadcast %c0_i32_12 : i32 to vector<8x128xi32>
    %48 = arith.cmpi slt, %44, %47 : vector<8x128xi32>
    %c0_i32_13 = arith.constant 0 : i32
    %49 = arith.cmpi slt, %42, %c0_i32_13 : i32
    %50 = vector.broadcast %49 : i1 to vector<8x128xi1>
    %51 = vector.broadcast %50 : vector<8x128xi1> to vector<8x128xi1>
    %52 = arith.xori %48, %51 : vector<8x128xi1>
    %53 = arith.andi %52, %46 : vector<8x128xi1>
    %54 = vector.broadcast %42 : i32 to vector<8x128xi32>
    %55 = arith.addi %44, %54 : vector<8x128xi32>
    %56 = arith.select %53, %55, %44 : vector<8x128xi1>, vector<8x128xi32>
    %c0_i32_14 = arith.constant 0 : i32
    %57 = vector.broadcast %c0_i32_14 : i32 to vector<8x128xi32>
    %58 = arith.cmpi eq, %56, %57 : vector<8x128xi32>
    %59 = vector.shape_cast %38 : vector<8x1xf32> to vector<8x1xf32>
    %60 = vector.broadcast %59 : vector<8x1xf32> to vector<8x128xf32>
    %61 = vector.shape_cast %39 : vector<8x1xf32> to vector<8x1xf32>
    %62 = vector.broadcast %61 : vector<8x1xf32> to vector<8x128xf32>
    %63 = arith.select %58, %60, %62 : vector<8x128xi1>, vector<8x128xf32>
    %64 = arith.mulf %27, %63 : vector<8x128xf32>
    %c0_15 = arith.constant 0 : index
    %c0_16 = arith.constant 0 : index
    %65 = vector.load %arg6[%c0_15, %c0_16] : memref<8x128xf32, #tpu.memory_space<vmem>>, vector<8x128xf32>
    tpu.vector_store %arg6[%c0_15, %c0_16], %64 {strides = array<i32>} : memref<8x128xf32, #tpu.memory_space<vmem>>, vector<8x128xf32>,
    %c0_17 = arith.constant 0 : index
    %c0_18 = arith.constant 0 : index
    %66 = vector.load %arg4[%c0_17, %c0_18] : memref<2x128xf32, #tpu.memory_space<vmem>>, vector<2x128xf32>
    %cst_19 = arith.constant dense<0.000000e+00> : vector<2x8xf32>
    %67 = tpu.matmul %66, %64, %cst_19 {dimension_numbers = #tpu.dot_dimension_numbers<[1], [1], [0], [0], [0, 0, 1, 0], [], []>} : vector<2x128xf32>, vector<8x128xf32>, vector<2x8xf32> -> vector<2x8xf32>
    %c0_20 = arith.constant 0 : index
    %c0_21 = arith.constant 0 : index
    %68 = vector.load %arg5[%c0_20, %c0_21] : memref<2x1xf32, #tpu.memory_space<vmem>>, vector<2x1xf32>
    %69 = vector.broadcast %68 : vector<2x1xf32> to vector<2x8xf32>
    %70 = arith.addf %67, %69 : vector<2x8xf32>
    %c0_22 = arith.constant 0 : index
    %c0_23 = arith.constant 0 : index
    %71 = vector.load %arg7[%c0_22, %c0_23] : memref<2x8xf32, #tpu.memory_space<vmem>>, vector<2x8xf32>
    tpu.vector_store %arg7[%c0_22, %c0_23], %70 {strides = array<i32>} : memref<2x8xf32, #tpu.memory_space<vmem>>, vector<2x8xf32>,
    return
  }
  func.func @transform_0(%arg0: i32) -> (i32, i32) {
    %c0_i32 = arith.constant 0 : i32
    %c0_i32_0 = arith.constant 0 : i32
    return %arg0, %c0_i32 : i32, i32
  }
  func.func @transform_1(%arg0: i32) -> (i32, i32) {
    %c0_i32 = arith.constant 0 : i32
    %c0_i32_0 = arith.constant 0 : i32
    %c0_i32_1 = arith.constant 0 : i32
    return %c0_i32, %c0_i32_0 : i32, i32
  }
  func.func @transform_2(%arg0: i32) -> (i32, i32) {
    %c0_i32 = arith.constant 0 : i32
    %c0_i32_0 = arith.constant 0 : i32
    %c0_i32_1 = arith.constant 0 : i32
    return %c0_i32, %c0_i32_0 : i32, i32
  }
  func.func @transform_3(%arg0: i32) -> (i32, i32) {
    %c0_i32 = arith.constant 0 : i32
    %c0_i32_0 = arith.constant 0 : i32
    %c0_i32_1 = arith.constant 0 : i32
    return %c0_i32, %c0_i32_0 : i32, i32
  }
  func.func @transform_4(%arg0: i32) -> (i32, i32) {
    %c0_i32 = arith.constant 0 : i32
    %c0_i32_0 = arith.constant 0 : i32
    %c0_i32_1 = arith.constant 0 : i32
    return %c0_i32, %c0_i32_0 : i32, i32
  }
  func.func @transform_5(%arg0: i32) -> (i32, i32) {
    %c0_i32 = arith.constant 0 : i32
    %c0_i32_0 = arith.constant 0 : i32
    return %arg0, %c0_i32 : i32, i32
  }
  func.func @transform_6(%arg0: i32) -> (i32, i32) {
    %c0_i32 = arith.constant 0 : i32
    %c0_i32_0 = arith.constant 0 : i32
    return %c0_i32, %arg0 : i32, i32
  }
}

</mosaic_0001>

<llo_original>
// kernel: _forward_jit.1
$region0: #{_forward_jit.1}
  #allocation0 [shape = 'u32[]', space=smem, size = 0x4, offset = 0x4, fixed_abs, tag = 'smem constant byte address 0x4 - core index']
  #allocation1 [shape = 'u32[144,128]{1,0:T(1,128)}', space=vmem, size = 0x12000, scoped, tag = 'internal scratch']
  %s0 = inlined_call_operand.vmem [shape: s32[8,3], index: 0, kind: input, shape index: {}]
  %s1 = inlined_call_operand.hbm [shape: bf16[128,256], index: 1, kind: input, shape index: {}]
  %s2 = inlined_call_operand.vmem [shape: f32[1,256], index: 2, kind: input, shape index: {}]
  %s3 = inlined_call_operand.vmem [shape: f32[2,128], index: 3, kind: input, shape index: {}]
  %s4 = inlined_call_operand.vmem [shape: f32[2,1], index: 4, kind: input, shape index: {}]
  %s5 = inlined_call_operand.hbm [shape: f32[8,128], index: 5, kind: output, shape index: {0}]
  %s6 = inlined_call_operand.hbm [shape: f32[2,8], index: 6, kind: output, shape index: {1}]
  %7 = xla_tuple %s5, %s6
  %s8 = sld [smem:[#allocation0]]
  $region42: #{_forward_jit.1} parent=0
    _
  %s10 = ssub.s32 1, %s8
  %s11 = scalar_select 0, %s10, %s8
  $region1: #{_forward_jit.1} parent=0
    #allocation2 [shape = 'u8[65536]{0}', space=vmem, size = 0x10000, scoped, tag = 'input window, operand 1, single buffered']
    #allocation3 [shape = 's32[1]{0}', space=sflag, size = 0x4, scoped, tag = 'scoped memory for _forward_jit.1']
    #allocation4 [shape = 's32[1]{0}', space=sflag, size = 0x4, scoped, tag = 'scoped memory for _forward_jit.1']
    #allocation5 [shape = 'u8[4096]{0}', space=vmem, size = 0x1000, scoped, tag = 'output window, operand 0, single buffered']
    #allocation6 [shape = 'u8[1024]{0}', space=vmem, size = 0x400, scoped, tag = 'output window, operand 1, single buffered']
    #allocation7 [shape = 's32[1]{0}', space=sflag, size = 0x4, scoped, tag = 'scoped memory for _forward_jit.1']
    %12 = vsyncpa [#allocation3], 0
    %13 = vsyncpa [#allocation4], 0
    %14 = vsyncpa [#allocation7], 0
    // Predicated region
    $region2: #{_forward_jit.1} parent=1 // pred_check
      _
    $region3: #{_forward_jit.1} parent=1 // pred_check_branch
      %16 = sbr.rel (0) target = $region5
    $region4: #{_forward_jit.1} parent=1 // pred_region
      _
    $region5: #{_forward_jit.1} parent=1 // pred_fallthru
      _
    // Predicated region
    $region6: #{_forward_jit.1} parent=1 // pred_check
      _
    $region7: #{_forward_jit.1} parent=1 // pred_check_branch
      %18 = sbr.rel (0) target = $region9
    $region8: #{_forward_jit.1} parent=1 // pred_region
      %s20 = ssub.s32 2048, 2048
      %21 = vsyncadd [#allocation3], %s20
      %s22 = sshll.u32 [#allocation2], 4
      %s23 = int_to_ptr.vmem [resolvable:$true] %s22
      %28 = dma.hbm_to_vmem [thread:$0]  %s1, 2048, %s23, [#allocation3], 128, 128, 8
    $region9: #{_forward_jit.1} parent=1 // pred_fallthru
      _
    // Predicated region
    $region10: #{_forward_jit.1} parent=1 // pred_check
      _
    $region11: #{_forward_jit.1} parent=1 // pred_check_branch
      %30 = sbr.rel (0) target = $region13
    $region12: #{_forward_jit.1} parent=1 // pred_region
      _
    $region13: #{_forward_jit.1} parent=1 // pred_fallthru
      _
    // Predicated region
    $region14: #{_forward_jit.1} parent=1 // pred_check
      _
    $region15: #{_forward_jit.1} parent=1 // pred_check_branch
      %32 = sbr.rel (0) target = $region17
    $region16: #{_forward_jit.1} parent=1 // pred_region
      _
    $region17: #{_forward_jit.1} parent=1 // pred_fallthru
      _
    // Predicated region
    $region18: #{_forward_jit.1} parent=1 // pred_check
      _
    $region19: #{_forward_jit.1} parent=1 // pred_check_branch
      %34 = sbr.rel (0) target = $region21
    $region20: #{_forward_jit.1} parent=1 // pred_region
      _
    $region21: #{_forward_jit.1} parent=1 // pred_fallthru
      _
    // Predicated region
    $region22: #{_forward_jit.1} parent=1 // pred_check
      _
    $region23: #{_forward_jit.1} parent=1 // pred_check_branch
      %36 = sbr.rel (0) target = $region25
    $region24: #{_forward_jit.1} parent=1 // pred_region
      %37 = dma.done [#allocation3], 2048
    $region25: #{_forward_jit.1} parent=1 // pred_fallthru
      _
    %v39 = vld [vmem:[%s0] sm:$0xff]
    %v40 = vlaneseq
    %v41 = vand.u32 %v40, 127
    %42 = vset.pattern.permute.xlu0 0
    %43 = vperm.xlu0 %42, %v39
    %v44 = vpop.permute.xlu0 %43
    %vm45 = vcmp.eq.s32.totalorder %v41, %v44
    %v46 = vadd.s32 %v39, 16
    %47 = vset.pattern.permute.xlu0 1
    %48 = vperm.xlu0 %47, %v46
    %v49 = vpop.permute.xlu0 %48
    %vm50 = vcmp.eq.s32.totalorder %v41, %v49
    %vm51 = vmor %vm45, %vm50
    %v52 = vadd.s32 %v39, 32
    %53 = vset.pattern.permute.xlu0 2
    %54 = vperm.xlu0 %53, %v52
    %v55 = vpop.permute.xlu0 %54
    %vm56 = vcmp.eq.s32.totalorder %v41, %v55
    %vm57 = vmor %vm51, %vm56
    %v58 = vsel %vm57, 1.0, 0.0
    %v59 = vpack.c.bf16 %v58, %v58
    %v60 = vld [vmem:[#allocation2] sm:$0xff]
    %v61 = vld [vmem:[#allocation2 + $0x8] sm:$0xff]
    %v62 = vld [vmem:[#allocation2 + $0x10] sm:$0xff]
    %v63 = vld [vmem:[#allocation2 + $0x18] sm:$0xff]
    %v64 = vld [vmem:[#allocation2 + $0x20] sm:$0xff]
    %v65 = vld [vmem:[#allocation2 + $0x28] sm:$0xff]
    %v66 = vld [vmem:[#allocation2 + $0x30] sm:$0xff]
    %v67 = vld [vmem:[#allocation2 + $0x38] sm:$0xff]
    %v68 = vld [vmem:[#allocation2 + $0x40] sm:$0xff]
    %v69 = vld [vmem:[#allocation2 + $0x48] sm:$0xff]
    %v70 = vld [vmem:[#allocation2 + $0x50] sm:$0xff]
    %v71 = vld [vmem:[#allocation2 + $0x58] sm:$0xff]
    %v72 = vld [vmem:[#allocation2 + $0x60] sm:$0xff]
    %v73 = vld [vmem:[#allocation2 + $0x68] sm:$0xff]
    %v74 = vld [vmem:[#allocation2 + $0x70] sm:$0xff]
    %v75 = vld [vmem:[#allocation2 + $0x78] sm:$0xff]
    %v76 = vld [vmem:[%s2] sm:$0x3]
    %v78 = vlaneseq
    %v79 = vshrl.u32 %v78, 7
    %v80 = vsub.s32 0, %v79
    %v81 = vrot.slane %v76, %v80
    %v82 = vlaneseq
    %v83 = vshrl.u32 %v82, 7
    %v84 = vsub.s32 1, %v83
    %v85 = vrot.slane %v76, %v84
    %v104 = vunpack.c.l.b16 %v60
    %v105 = vunpack.c.h.b16 %v60
    %v106 = vunpack.c.l.b16 %v61
    %v107 = vunpack.c.h.b16 %v61
    %v108 = vunpack.c.l.b16 %v62
    %v109 = vunpack.c.h.b16 %v62
    %v110 = vunpack.c.l.b16 %v63
    %v111 = vunpack.c.h.b16 %v63
    %v112 = vunpack.c.l.b16 %v64
    %v113 = vunpack.c.h.b16 %v64
    %v114 = vunpack.c.l.b16 %v65
    %v115 = vunpack.c.h.b16 %v65
    %v116 = vunpack.c.l.b16 %v66
    %v117 = vunpack.c.h.b16 %v66
    %v118 = vunpack.c.l.b16 %v67
    %v119 = vunpack.c.h.b16 %v67
    %v120 = vunpack.c.l.b16 %v68
    %v121 = vunpack.c.h.b16 %v68
    %v122 = vunpack.c.l.b16 %v69
    %v123 = vunpack.c.h.b16 %v69
    %v124 = vunpack.c.l.b16 %v70
    %v125 = vunpack.c.h.b16 %v70
    %v126 = vunpack.c.l.b16 %v71
    %v127 = vunpack.c.h.b16 %v71
    %v128 = vunpack.c.l.b16 %v72
    %v129 = vunpack.c.h.b16 %v72
    %v130 = vunpack.c.l.b16 %v73
    %v131 = vunpack.c.h.b16 %v73
    %v132 = vunpack.c.l.b16 %v74
    %v133 = vunpack.c.h.b16 %v74
    %v134 = vunpack.c.l.b16 %v75
    %v135 = vunpack.c.h.b16 %v75
    %v136 = vpack.c.b16 %v106, %v104
    %v137 = vpack.c.b16 %v107, %v105
    %v138 = vpack.c.b16 %v110, %v108
    %v139 = vpack.c.b16 %v111, %v109
    %v140 = vpack.c.b16 %v114, %v112
    %v141 = vpack.c.b16 %v115, %v113
    %v142 = vpack.c.b16 %v118, %v116
    %v143 = vpack.c.b16 %v119, %v117
    %v144 = vpack.c.b16 %v122, %v120
    %v145 = vpack.c.b16 %v123, %v121
    %v146 = vpack.c.b16 %v126, %v124
    %v147 = vpack.c.b16 %v127, %v125
    %v148 = vpack.c.b16 %v130, %v128
    %v149 = vpack.c.b16 %v131, %v129
    %v150 = vpack.c.b16 %v134, %v132
    %v151 = vpack.c.b16 %v135, %v133
    %168 = vmatprep.subr.bf16.mxu0 %v137
    %169 = vmatpush1.bf16.msra.mxu0 %v136
    %170 = vmatprep.subr.bf16.mxu0 %v139
    %171 = vmatpush1.bf16.msra.mxu0 %v138
    %172 = vmatprep.subr.bf16.mxu0 %v141
    %173 = vmatpush1.bf16.msra.mxu0 %v140
    %174 = vmatprep.subr.bf16.mxu0 %v143
    %175 = vmatpush1.bf16.msra.mxu0 %v142
    %176 = vmatprep.subr.bf16.mxu0 %v145
    %177 = vmatpush1.bf16.msra.mxu0 %v144
    %178 = vmatprep.subr.bf16.mxu0 %v147
    %179 = vmatpush1.bf16.msra.mxu0 %v146
    %180 = vmatprep.subr.bf16.mxu0 %v149
    %181 = vmatpush1.bf16.msra.mxu0 %v148
    %182 = vmatprep.subr.bf16.mxu0 %v151
    %183 = vmatpush1.bf16.msra.mxu0 %v150
    %184 = vmatprep.subr.bf16.mxu0 0
    %185 = vmatpush1.bf16.msra.mxu0 0
    %186 = vmatprep.subr.bf16.mxu0 0
    %187 = vmatpush1.bf16.msra.mxu0 0
    %188 = vmatprep.subr.bf16.mxu0 0
    %189 = vmatpush1.bf16.msra.mxu0 0
    %190 = vmatprep.subr.bf16.mxu0 0
    %191 = vmatpush1.bf16.msra.mxu0 0
    %192 = vmatprep.subr.bf16.mxu0 0
    %193 = vmatpush1.bf16.msra.mxu0 0
    %194 = vmatprep.subr.bf16.mxu0 0
    %195 = vmatpush1.bf16.msra.mxu0 0
    %196 = vmatprep.subr.bf16.mxu0 0
    %197 = vmatpush1.bf16.msra.mxu0 0
    %198 = vmatprep.subr.bf16.mxu0 0
    %199 = vmatpush1.bf16.msra.mxu0 0
    %200 = vmatprep.mubr.bf16.mxu0 0
    %201 = vmatmul.mubr.bf16.gmra.mrb[0].mxu0 %v59
    %v202 = vpop.f32.mrb[0].mxu0
    %v203 = vadd.f32 %v81, %v202
    %v204 = vpop.f32.mrb[0].mxu0
    %v205 = vadd.f32 %v85, %v204
    %v206 = vpop.f32.mrb[0].mxu0
    %v207 = vpop.f32.mrb[0].mxu0
    %208 = vdwg.mxu0
    %v209 = vmax.f32 %v203, 0.0
    %211 = vrot.lane.b32.xlu0 %v205, 127
    %v212 = vpop.permute.xlu0 %211
    %v214 = vmax.f32 %v205, %v212
    %v215 = vsub.f32 %v205, %v214
    %v216 = vmul.f32 %v215, 1.442695
    %v217 = vpow.pop %v216
    %219 = vrot.lane.b32.xlu0 %v214, 1
    %v220 = vpop.permute.xlu0 %219
    %v222 = vsub.f32 %v205, %v220
    %v223 = vmul.f32 %v222, 1.442695
    %v224 = vpow.pop %v223
    %226 = vrot.lane.b32.xlu0 %v224, 127
    %v227 = vpop.permute.xlu0 %226
    %v229 = vadd.f32 %v217, %v227
    %v230 = vrcp.pop %v229
    %v231 = vmul.f32 1.0, %v230
    %v232 = vmul.f32 %v217, %v231
    %234 = vrot.lane.b32.xlu0 %v231, 1
    %v235 = vpop.permute.xlu0 %234
    %v237 = vmul.f32 %v224, %v235
    %vm238 = vcmp.lt.s32.totalorder %v41, 0
    %v239 = vsub.s32 0, %v41
    %v240 = vsel %vm238, %v239, %v41
    %v241 = vshrl.u32 %v240, 1
    %v242 = vand.u32 %v240, 1
    %v243 = vsub.s32 0, %v242
    %v244 = vsel %vm238, %v243, %v242
    %vm245 = vcmp.ne.s32.totalorder %v244, 0
    %vm246 = vcmp.lt.s32.totalorder %v244, 0
    %vm247 = vmand %vm246, %vm245
    %v248 = vadd.s32 %v244, 2
    %v249 = vsel %vm247, %v248, %v244
    %vm250 = vcmp.eq.s32.totalorder %v249, 0
    %252 = vset.pattern.permute.xlu0 0
    %253 = vperm.xlu0 %252, %v232
    %v254 = vpop.permute.xlu0 %253
    %257 = vset.pattern.permute.xlu0 1
    %258 = vperm.xlu0 %257, %v237
    %v259 = vpop.permute.xlu0 %258
    %v261 = vsel %vm250, %v254, %v259
    %v262 = vmul.f32 %v209, %v261
    %263 = vst [vmem:[#allocation5] sm:$0xff] %v262
    %v264 = vld [vmem:[%s3] sm:$0x3]
    %v265 = vld [vmem:[%s4] sm:$0x3]
    %267 = vset.pattern.permute.xlu0 0
    %268 = vperm.xlu0 %267, %v265
    %v269 = vpop.permute.xlu0 %268
    %271 = vmatprep.subr.mxu0 0.0
    %272 = vmatpush1.xpose.msra.mxu0 %v262
    %273 = vmatprep.subr.mxu0 0.0
    %274 = vmatpush1.xpose.msra.mxu0 0.0
    %275 = vmatprep.subr.mxu0 0.0
    %276 = vmatpush1.xpose.msra.mxu0 0.0
    %277 = vmatprep.subr.mxu0 0.0
    %278 = vmatpush1.xpose.msra.mxu0 0.0
    %279 = vmatprep.subr.mxu0 0.0
    %280 = vmatpush1.xpose.msra.mxu0 0.0
    %281 = vmatprep.subr.mxu0 0.0
    %282 = vmatpush1.xpose.msra.mxu0 0.0
    %283 = vmatprep.subr.mxu0 0.0
    %284 = vmatpush1.xpose.msra.mxu0 0.0
    %285 = vmatprep.subr.mxu0 0.0
    %286 = vmatpush1.xpose.msra.mxu0 0.0
    %287 = vmatprep.subr.mxu0 0.0
    %288 = vmatpush1.xpose.msra.mxu0 0.0
    %289 = vmatprep.subr.mxu0 0.0
    %290 = vmatpush1.xpose.msra.mxu0 0.0
    %291 = vmatprep.subr.mxu0 0.0
    %292 = vmatpush1.xpose.msra.mxu0 0.0
    %293 = vmatprep.subr.mxu0 0.0
    %294 = vmatpush1.xpose.msra.mxu0 0.0
    %295 = vmatprep.subr.mxu0 0.0
    %296 = vmatpush1.xpose.msra.mxu0 0.0
    %297 = vmatprep.subr.mxu0 0.0
    %298 = vmatpush1.xpose.msra.mxu0 0.0
    %299 = vmatprep.subr.mxu0 0.0
    %300 = vmatpush1.xpose.msra.mxu0 0.0
    %301 = vmatprep.subr.mxu0 0.0
    %302 = vmatpush1.xpose.msra.mxu0 0.0
    %303 = vmatprep.subr.mxu0 0.0
    %304 = vmatpush1.xpose.msra.mxu0 0.0
    %305 = vmatprep.subr.mxu0 0.0
    %306 = vmatpush1.xpose.msra.mxu0 0.0
    %307 = vmatprep.subr.mxu0 0.0
    %308 = vmatpush1.xpose.msra.mxu0 0.0
    %309 = vmatprep.subr.mxu0 0.0
    %310 = vmatpush1.xpose.msra.mxu0 0.0
    %311 = vmatprep.subr.mxu0 0.0
    %312 = vmatpush1.xpose.msra.mxu0 0.0
    %313 = vmatprep.subr.mxu0 0.0
    %314 = vmatpush1.xpose.msra.mxu0 0.0
    %315 = vmatprep.subr.mxu0 0.0
    %316 = vmatpush1.xpose.msra.mxu0 0.0
    %317 = vmatprep.subr.mxu0 0.0
    %318 = vmatpush1.xpose.msra.mxu0 0.0
    %319 = vmatprep.subr.mxu0 0.0
    %320 = vmatpush1.xpose.msra.mxu0 0.0
    %321 = vmatprep.subr.mxu0 0.0
    %322 = vmatpush1.xpose.msra.mxu0 0.0
    %323 = vmatprep.subr.mxu0 0.0
    %324 = vmatpush1.xpose.msra.mxu0 0.0
    %325 = vmatprep.subr.mxu0 0.0
    %326 = vmatpush1.xpose.msra.mxu0 0.0
    %327 = vmatprep.subr.mxu0 0.0
    %328 = vmatpush1.xpose.msra.mxu0 0.0
    %329 = vmatprep.subr.mxu0 0.0
    %330 = vmatpush1.xpose.msra.mxu0 0.0
    %331 = vmatprep.subr.mxu0 0.0
    %332 = vmatpush1.xpose.msra.mxu0 0.0
    %333 = vmatprep.subr.mxu0 0.0
    %334 = vmatpush1.xpose.msra.mxu0 0.0
    %335 = vmatprep.mubr.f32.mxu0 0.0
    %336 = vmatmul.mubr.f32.gmra.mrb[0].mxu0 %v264
    %v337 = vpop.f32.mrb[0].mxu0
    %v338 = vadd.f32 %v269, %v337
    %v339 = vpop.f32.mrb[0].mxu0
    %340 = vdwg.mxu0
    %vm341 = vcmask 58368
    %342 = vst.msk [vmem:[#allocation6] sm:$0x3] %vm341, %v338
    // Predicated region
    $region26: #{_forward_jit.1} parent=1 // pred_check
      _
    $region27: #{_forward_jit.1} parent=1 // pred_check_branch
      %344 = sbr.rel (0) target = $region29
    $region28: #{_forward_jit.1} parent=1 // pred_region
      %s346 = ssub.s32 128, 128
      %347 = vsyncadd [#allocation4], %s346
      %s349 = sshll.u32 [#allocation5], 4
      %s350 = int_to_ptr.vmem [resolvable:$true] %s349
      %352 = dma.vmem_to_hbm [thread:$0]  %s350, 128, %s5, [#allocation4]
    $region29: #{_forward_jit.1} parent=1 // pred_fallthru
      _
    // Predicated region
    $region30: #{_forward_jit.1} parent=1 // pred_check
      _
    $region31: #{_forward_jit.1} parent=1 // pred_check_branch
      %354 = sbr.rel (0) target = $region33
    $region32: #{_forward_jit.1} parent=1 // pred_region
      %s356 = ssub.s32 32, 32
      %357 = vsyncadd [#allocation7], %s356
      %s359 = sshll.u32 [#allocation6], 4
      %s360 = int_to_ptr.vmem [resolvable:$true] %s359
      %362 = dma.vmem_to_hbm [thread:$0]  %s360, 32, %s6, [#allocation7]
    $region33: #{_forward_jit.1} parent=1 // pred_fallthru
      _
    // Predicated region
    $region34: #{_forward_jit.1} parent=1 // pred_check
      _
    $region35: #{_forward_jit.1} parent=1 // pred_check_branch
      %364 = sbr.rel (0) target = $region37
    $region36: #{_forward_jit.1} parent=1 // pred_region
      %365 = dma.done [#allocation4], 128
    $region37: #{_forward_jit.1} parent=1 // pred_fallthru
      _
    // Predicated region
    $region38: #{_forward_jit.1} parent=1 // pred_check
      _
    $region39: #{_forward_jit.1} parent=1 // pred_check_branch
      %367 = sbr.rel (0) target = $region41
    $region40: #{_forward_jit.1} parent=1 // pred_region
      %368 = dma.done [#allocation7], 32
    $region41: #{_forward_jit.1} parent=1 // pred_fallthru
      _
    %369 = vsyncpa [#allocation3], 1
    %370 = vsyncpa [#allocation4], 1
    %371 = vsyncpa [#allocation7], 1

</llo_original>
